<compile_context>
chip_gen: v6e
topology: v6e:2x2x1
jax: 0.10.0
libtpu: 0.0.40
codegen_flags: <defaults>
</compile_context>

<pallas_src>
import functools

import jax
import jax.numpy as jnp
from jax.experimental import pallas as pl
from jax.experimental.pallas import tpu as pltpu


def mlp_kernel(x_ref, w11t_ref, b11_ref, w2a_ref, w2b_ref, b2_ref,
               w3t_ref, b3_ref, o_ref):
    # x_ref: (2, tm, d1) f32 — both input streams for this row tile.
    tm = x_ref.shape[1]
    d1 = x_ref.shape[2]

    # Stack the two streams along rows (layout-free: tm % 8 == 0, last dim
    # unchanged) and cast to bf16 in VMEM so fc11 is ONE MXU matmul.
    xx = x_ref[...].reshape(2 * tm, d1).astype(jnp.bfloat16)

    # fc11 for BOTH streams (bf16 operands, f32 accumulate) + bias + ReLU.
    h = jnp.dot(xx, w11t_ref[...], preferred_element_type=jnp.float32) + b11_ref[...]
    h = jnp.maximum(h, 0.0)                                  # f32 (2*tm, H)

    # Split while still f32 (8-row sublane tiles -> free view), then cast.
    h11 = h[:tm, :].astype(jnp.bfloat16)
    h12 = h[tm:, :].astype(jnp.bfloat16)

    # fc2(cat([h11, h12])) == h11 @ W2t[:H] + h12 @ W2t[H:] (weights pre-split).
    h2 = (jnp.dot(h11, w2a_ref[...], preferred_element_type=jnp.float32)
          + jnp.dot(h12, w2b_ref[...], preferred_element_type=jnp.float32)
          + b2_ref[...])
    h2 = jnp.maximum(h2, 0.0).astype(jnp.bfloat16)           # (tm, H)

    # fc3 into a lane-dense (128-wide zero-padded) output slab; f32 store keeps
    # the module's output precision.
    out = jnp.dot(h2, w3t_ref[...], preferred_element_type=jnp.float32) + b3_ref[...]
    o_ref[...] = out.astype(o_ref.dtype)


def _pick_tm(M):
    """Largest row tile (<=512, multiple of 8) dividing M, capped so the grid
    has >= 2 steps (keeps both v7x TensorCores busy)."""
    tm = None
    for cand in (512, 256, 128, 64, 32, 16, 8):
        if cand <= M and M % cand == 0:
            tm = cand
            break
    # TODO(synk): pad ragged M (not a multiple of 8) instead of asserting.
    assert tm is not None, "M = B*S must be a multiple of 8"
    while M >= 16 and M // tm < 2 and tm > 8:
        tm //= 2
    return tm


def _vmem_limit_bytes(tm, d1, H, d2p):
    bf16, f32 = 2, 4
    x_io = 2 * (2 * tm * d1) * f32                          # double-buffered input tile
    out_io = 2 * (tm * d2p) * f32                           # double-buffered output tile
    wts = 2 * (d1 * H + 2 * H * H + H * d2p) * bf16         # grid-invariant (2 bufs)
    bias = 2 * (2 * H + d2p) * f32
    interm = ((2 * tm * d1) * bf16 + (2 * tm * H) * (f32 + bf16)
              + (tm * H) * (f32 + bf16) + (tm * d2p) * f32)
    need = x_io + out_io + wts + bias + interm
    # Generous headroom, but stay within v7x's 64 MiB physical VMEM per core.
    return int(min(max(2 * need, 32 * 2 ** 20), 64 * 2 ** 20))


def prepare_params(w11, b11, w2, b2, w3, b3):
    """One-time weight prep (run OUTSIDE the per-call hot path): transpose,
    split fc2 into its two K-halves, lane-pad fc3/b3, cast weights to bf16."""
    H, _ = int(w11.shape[0]), int(w11.shape[1])
    d2 = int(w3.shape[0])
    d2p = max(128, ((d2 + 127) // 128) * 128)
    w11t = jnp.asarray(w11, jnp.float32).T.astype(jnp.bfloat16)            # (d1, H)
    w2a = jnp.asarray(w2[:, :H], jnp.float32).T.astype(jnp.bfloat16)       # (H, H) for h11
    w2b = jnp.asarray(w2[:, H:], jnp.float32).T.astype(jnp.bfloat16)       # (H, H) for h12
    w3t = jnp.zeros((H, d2p), jnp.bfloat16).at[:, :d2].set(
        jnp.asarray(w3, jnp.float32).T.astype(jnp.bfloat16))               # (H, d2p)
    b11r = jnp.asarray(b11, jnp.float32).reshape(1, H)
    b2r = jnp.asarray(b2, jnp.float32).reshape(1, H)
    b3r = jnp.zeros((1, d2p), jnp.float32).at[:, :d2].set(
        jnp.asarray(b3, jnp.float32))
    return (w11t, b11r, w2a, w2b, b2r, w3t, b3r)


@functools.partial(jax.jit, static_argnames=("d2",))
def mlp_forward(x, params, *, d2):
    """x: (2, B, S, d1) f32.  params: output of prepare_params().  -> (B, S, d2)."""
    w11t, b11r, w2a, w2b, b2r, w3t, b3r = params
    two, B, S, d1 = x.shape
    assert two == 2
    H = w11t.shape[1]
    d2p = w3t.shape[1]
    M = B * S
    tm = _pick_tm(M)
    n_tiles = M // tm
    assert tm % 8 == 0 and M % tm == 0

    xs = x.reshape(2, M, d1)  # free view; no copy / no cast in the wrapper

    inv = lambda *shape: pl.BlockSpec(shape, lambda i: (0,) * len(shape))  # grid-invariant

    flops = 4 * M * d1 * H + 4 * M * H * H + 2 * M * H * d2p
    bytes_accessed = (2 * M * d1 * 4 + M * d2p * 4
                      + (d1 * H + 2 * H * H + H * d2p) * 2
                      + (2 * H + d2p) * 4)

    out = pl.pallas_call(
        mlp_kernel,
        out_shape=jax.ShapeDtypeStruct((M, d2p), x.dtype),
        grid_spec=pltpu.PrefetchScalarGridSpec(
            num_scalar_prefetch=0,
            grid=(n_tiles,),
            in_specs=[
                pl.BlockSpec((2, tm, d1), lambda i: (0, i, 0)),  # both streams, row tile i
                inv(d1, H),        # fc11 weight^T  (bf16)
                inv(1, H),         # fc11 bias      (f32)
                inv(H, H),         # fc2 weight^T, h11 half (bf16)
                inv(H, H),         # fc2 weight^T, h12 half (bf16)
                inv(1, H),         # fc2 bias       (f32)
                inv(H, d2p),       # fc3 weight^T, lane-padded (bf16)
                inv(1, d2p),       # fc3 bias, lane-padded     (f32)
            ],
            out_specs=pl.BlockSpec((tm, d2p), lambda i: (i, 0)),
        ),
        compiler_params=pltpu.CompilerParams(
            dimension_semantics=("parallel",),
            vmem_limit_bytes=_vmem_limit_bytes(tm, d1, H, d2p)),
        cost_estimate=pl.CostEstimate(flops=flops, transcendentals=0,
                                      bytes_accessed=bytes_accessed),
        # TODO(synk): for large H that no longer fits resident (esp. v7x 64 MiB
        # VMEM), add a K-tiled 'arbitrary' grid axis + f32 accumulator scratch,
        # and pipeline_mode=pl.Buffered(1) on the grid-invariant weight specs.
    )(xs, w11t, b11r, w2a, w2b, b2r, w3t, b3r)

    return out[:, :d2].reshape(B, S, d2)


def init_linear(key, out_features, in_features):
    # Deterministic init mimicking nn.Linear's uniform(-1/sqrt(fan_in), 1/sqrt(fan_in)).
    kw, kb = jax.random.split(key)
    bound = 1.0 / jnp.sqrt(jnp.float32(in_features))
    w = jax.random.uniform(kw, (out_features, in_features), jnp.float32, -bound, bound)
    b = jax.random.uniform(kb, (out_features,), jnp.float32, -bound, bound)
    return w, b


if __name__ == "__main__":
    d1, d2, hiddensize = 32, 16, 32
    B, S = 2, 8

    key = jax.random.PRNGKey(0)
    kx, k1, k2, k3 = jax.random.split(key, 4)

    x = jax.random.normal(kx, (2, B, S, d1), jnp.float32)
    w11, b11 = init_linear(k1, hiddensize, d1)
    w2, b2 = init_linear(k2, hiddensize, 2 * hiddensize)
    w3, b3 = init_linear(k3, d2, hiddensize)

    # Weight prep happens ONCE, outside the per-call hot path.
    params = prepare_params(w11, b11, w2, b2, w3, b3)
    params = jax.block_until_ready(params)

    out = mlp_forward(x, params, d2=d2)
    out = jax.block_until_ready(out)

    # Pure-JAX f32 reference (same math as the PyTorch forward). Tolerance is
    # loosened because the kernel uses bf16 MXU operands (f32 accumulation).
    def ref(x):
        h11 = jax.nn.relu(x[0] @ w11.T + b11)
        h12 = jax.nn.relu(x[1] @ w11.T + b11)
        h2 = jax.nn.relu(jnp.concatenate([h11, h12], axis=-1) @ w2.T + b2)
        return h2 @ w3.T + b3

    assert out.shape == (B, S, d2)
    assert jnp.allclose(out, ref(x), atol=2e-2, rtol=2e-2)
    print("KERNEL_OK")
</pallas_src>

<mosaic_0001>
module attributes {stable_mosaic.version = 11 : i64} {
  func.func @mlp_kernel(%arg0: i32, %arg1: memref<2x8x32xf32, #tpu.memory_space<vmem>>, %arg2: memref<32x32xbf16, #tpu.memory_space<vmem>>, %arg3: memref<1x32xf32, #tpu.memory_space<vmem>>, %arg4: memref<32x32xbf16, #tpu.memory_space<vmem>>, %arg5: memref<32x32xbf16, #tpu.memory_space<vmem>>, %arg6: memref<1x32xf32, #tpu.memory_space<vmem>>, %arg7: memref<32x128xbf16, #tpu.memory_space<vmem>>, %arg8: memref<1x128xf32, #tpu.memory_space<vmem>>, %arg9: memref<8x128xf32, #tpu.memory_space<vmem>>) attributes {dimension_semantics = [#tpu.dimension_semantics<parallel>], iteration_bounds = array<i64: 2>, scalar_prefetch = 0 : i64, scratch_operands = 0 : i64, tpu.core_type = #tpu.core_type<tc>, window_params = [{transform_indices = @transform_0, window_bounds = array<i64: 2, 8, 32>}, {pipeline_mode = #tpu.pipeline_mode<synchronous>, transform_indices = @transform_1, window_bounds = array<i64: 32, 32>}, {pipeline_mode = #tpu.pipeline_mode<synchronous>, transform_indices = @transform_2, window_bounds = array<i64: 1, 32>}, {pipeline_mode = #tpu.pipeline_mode<synchronous>, transform_indices = @transform_3, window_bounds = array<i64: 32, 32>}, {pipeline_mode = #tpu.pipeline_mode<synchronous>, transform_indices = @transform_4, window_bounds = array<i64: 32, 32>}, {pipeline_mode = #tpu.pipeline_mode<synchronous>, transform_indices = @transform_5, window_bounds = array<i64: 1, 32>}, {pipeline_mode = #tpu.pipeline_mode<synchronous>, transform_indices = @transform_6, window_bounds = array<i64: 32, 128>}, {pipeline_mode = #tpu.pipeline_mode<synchronous>, transform_indices = @transform_7, window_bounds = array<i64: 1, 128>}, {transform_indices = @transform_8, window_bounds = array<i64: 8, 128>}]} {
    %c0 = arith.constant 0 : index
    %c0_0 = arith.constant 0 : index
    %c0_1 = arith.constant 0 : index
    %0 = vector.load %arg1[%c0, %c0_0, %c0_1] : memref<2x8x32xf32, #tpu.memory_space<vmem>>, vector<2x8x32xf32>
    %1 = vector.shape_cast %0 : vector<2x8x32xf32> to vector<16x32xf32>
    %2 = arith.truncf %1 : vector<16x32xf32> to vector<16x32xbf16>
    %c0_2 = arith.constant 0 : index
    %c0_3 = arith.constant 0 : index
    %3 = vector.load %arg2[%c0_2, %c0_3] : memref<32x32xbf16, #tpu.memory_space<vmem>>, vector<32x32xbf16>
    %cst = arith.constant dense<0.000000e+00> : vector<16x32xf32>
    %4 = tpu.matmul %2, %3, %cst {dimension_numbers = #tpu.dot_dimension_numbers<[1], [0], [0], [1], [0, 0, 1, 1], [], []>} : vector<16x32xbf16>, vector<32x32xbf16>, vector<16x32xf32> -> vector<16x32xf32>
    %c0_4 = arith.constant 0 : index
    %c0_5 = arith.constant 0 : index
    %5 = vector.load %arg3[%c0_4, %c0_5] : memref<1x32xf32, #tpu.memory_space<vmem>>, vector<1x32xf32>
    %6 = vector.broadcast %5 : vector<1x32xf32> to vector<16x32xf32>
    %7 = arith.addf %4, %6 : vector<16x32xf32>
    %cst_6 = arith.constant 0.000000e+00 : f32
    %8 = vector.broadcast %cst_6 : f32 to vector<16x32xf32>
    %9 = arith.maximumf %7, %8 : vector<16x32xf32>
    %10 = vector.extract_strided_slice %9 {offsets = [0, 0], sizes = [8, 32], strides = [1, 1]} : vector<16x32xf32> to vector<8x32xf32>
    %11 = arith.truncf %10 : vector<8x32xf32> to vector<8x32xbf16>
    %12 = vector.extract_strided_slice %9 {offsets = [8, 0], sizes = [8, 32], strides = [1, 1]} : vector<16x32xf32> to vector<8x32xf32>
    %13 = arith.truncf %12 : vector<8x32xf32> to vector<8x32xbf16>
    %c0_7 = arith.constant 0 : index
    %c0_8 = arith.constant 0 : index
    %14 = vector.load %arg4[%c0_7, %c0_8] : memref<32x32xbf16, #tpu.memory_space<vmem>>, vector<32x32xbf16>
    %cst_9 = arith.constant dense<0.000000e+00> : vector<8x32xf32>
    %15 = tpu.matmul %11, %14, %cst_9 {dimension_numbers = #tpu.dot_dimension_numbers<[1], [0], [0], [1], [0, 0, 1, 1], [], []>} : vector<8x32xbf16>, vector<32x32xbf16>, vector<8x32xf32> -> vector<8x32xf32>
    %c0_10 = arith.constant 0 : index
    %c0_11 = arith.constant 0 : index
    %16 = vector.load %arg5[%c0_10, %c0_11] : memref<32x32xbf16, #tpu.memory_space<vmem>>, vector<32x32xbf16>
    %cst_12 = arith.constant dense<0.000000e+00> : vector<8x32xf32>
    %17 = tpu.matmul %13, %16, %cst_12 {dimension_numbers = #tpu.dot_dimension_numbers<[1], [0], [0], [1], [0, 0, 1, 1], [], []>} : vector<8x32xbf16>, vector<32x32xbf16>, vector<8x32xf32> -> vector<8x32xf32>
    %18 = arith.addf %15, %17 : vector<8x32xf32>
    %c0_13 = arith.constant 0 : index
    %c0_14 = arith.constant 0 : index
    %19 = vector.load %arg6[%c0_13, %c0_14] : memref<1x32xf32, #tpu.memory_space<vmem>>, vector<1x32xf32>
    %20 = vector.broadcast %19 : vector<1x32xf32> to vector<8x32xf32>
    %21 = arith.addf %18, %20 : vector<8x32xf32>
    %cst_15 = arith.constant 0.000000e+00 : f32
    %22 = vector.broadcast %cst_15 : f32 to vector<8x32xf32>
    %23 = arith.maximumf %21, %22 : vector<8x32xf32>
    %24 = arith.truncf %23 : vector<8x32xf32> to vector<8x32xbf16>
    %c0_16 = arith.constant 0 : index
    %c0_17 = arith.constant 0 : index
    %25 = vector.load %arg7[%c0_16, %c0_17] : memref<32x128xbf16, #tpu.memory_space<vmem>>, vector<32x128xbf16>
    %cst_18 = arith.constant dense<0.000000e+00> : vector<8x128xf32>
    %26 = tpu.matmul %24, %25, %cst_18 {dimension_numbers = #tpu.dot_dimension_numbers<[1], [0], [0], [1], [0, 0, 1, 1], [], []>} : vector<8x32xbf16>, vector<32x128xbf16>, vector<8x128xf32> -> vector<8x128xf32>
    %c0_19 = arith.constant 0 : index
    %c0_20 = arith.constant 0 : index
    %27 = vector.load %arg8[%c0_19, %c0_20] : memref<1x128xf32, #tpu.memory_space<vmem>>, vector<1x128xf32>
    %28 = vector.broadcast %27 : vector<1x128xf32> to vector<8x128xf32>
    %29 = arith.addf %26, %28 : vector<8x128xf32>
    %c0_21 = arith.constant 0 : index
    %c0_22 = arith.constant 0 : index
    %30 = vector.load %arg9[%c0_21, %c0_22] : memref<8x128xf32, #tpu.memory_space<vmem>>, vector<8x128xf32>
    tpu.vector_store %arg9[%c0_21, %c0_22], %29 {strides = array<i32>} : memref<8x128xf32, #tpu.memory_space<vmem>>, vector<8x128xf32>,
    return
  }
  func.func @transform_0(%arg0: i32) -> (i32, i32, i32) {
    %c0_i32 = arith.constant 0 : i32
    %c0_i32_0 = arith.constant 0 : i32
    %c0_i32_1 = arith.constant 0 : i32
    return %c0_i32, %arg0, %c0_i32_0 : i32, i32, i32
  }
  func.func @transform_1(%arg0: i32) -> (i32, i32) {
    %c0_i32 = arith.constant 0 : i32
    %c0_i32_0 = arith.constant 0 : i32
    %c0_i32_1 = arith.constant 0 : i32
    return %c0_i32, %c0_i32_0 : i32, i32
  }
  func.func @transform_2(%arg0: i32) -> (i32, i32) {
    %c0_i32 = arith.constant 0 : i32
    %c0_i32_0 = arith.constant 0 : i32
    %c0_i32_1 = arith.constant 0 : i32
    return %c0_i32, %c0_i32_0 : i32, i32
  }
  func.func @transform_3(%arg0: i32) -> (i32, i32) {
    %c0_i32 = arith.constant 0 : i32
    %c0_i32_0 = arith.constant 0 : i32
    %c0_i32_1 = arith.constant 0 : i32
    return %c0_i32, %c0_i32_0 : i32, i32
  }
  func.func @transform_4(%arg0: i32) -> (i32, i32) {
    %c0_i32 = arith.constant 0 : i32
    %c0_i32_0 = arith.constant 0 : i32
    %c0_i32_1 = arith.constant 0 : i32
    return %c0_i32, %c0_i32_0 : i32, i32
  }
  func.func @transform_5(%arg0: i32) -> (i32, i32) {
    %c0_i32 = arith.constant 0 : i32
    %c0_i32_0 = arith.constant 0 : i32
    %c0_i32_1 = arith.constant 0 : i32
    return %c0_i32, %c0_i32_0 : i32, i32
  }
  func.func @transform_6(%arg0: i32) -> (i32, i32) {
    %c0_i32 = arith.constant 0 : i32
    %c0_i32_0 = arith.constant 0 : i32
    %c0_i32_1 = arith.constant 0 : i32
    return %c0_i32, %c0_i32_0 : i32, i32
  }
  func.func @transform_7(%arg0: i32) -> (i32, i32) {
    %c0_i32 = arith.constant 0 : i32
    %c0_i32_0 = arith.constant 0 : i32
    %c0_i32_1 = arith.constant 0 : i32
    return %c0_i32, %c0_i32_0 : i32, i32
  }
  func.func @transform_8(%arg0: i32) -> (i32, i32) {
    %c0_i32 = arith.constant 0 : i32
    %c0_i32_0 = arith.constant 0 : i32
    return %arg0, %c0_i32 : i32, i32
  }
}

</mosaic_0001>

<llo_original>
// kernel: mlp_forward.1
$region0: #{mlp_forward.1}
  #allocation0 [shape = 'u32[]', space=smem, size = 0x4, offset = 0x4, fixed_abs, tag = 'smem constant byte address 0x4 - core index']
  #allocation1 [shape = 'u32[144,128]{1,0:T(1,128)}', space=vmem, size = 0x12000, scoped, tag = 'internal scratch']
  %s0 = inlined_call_operand.hbm [shape: f32[2,16,32], index: 0, kind: input, shape index: {}]
  %s1 = inlined_call_operand.hbm [shape: bf16[32,32], index: 1, kind: input, shape index: {}]
  %s2 = inlined_call_operand.vmem [shape: f32[1,32], index: 2, kind: input, shape index: {}]
  %s3 = inlined_call_operand.hbm [shape: bf16[32,32], index: 3, kind: input, shape index: {}]
  %s4 = inlined_call_operand.hbm [shape: bf16[32,32], index: 4, kind: input, shape index: {}]
  %s5 = inlined_call_operand.vmem [shape: f32[1,32], index: 5, kind: input, shape index: {}]
  %s6 = inlined_call_operand.hbm [shape: bf16[32,128], index: 6, kind: input, shape index: {}]
  %s7 = inlined_call_operand.vmem [shape: f32[1,128], index: 7, kind: input, shape index: {}]
  %s8 = inlined_call_operand.vmem [shape: f32[16,128], index: 8, kind: output, shape index: {}]
  %s9 = sld [smem:[#allocation0]]
  $region85: #{mlp_forward.1} parent=0
    _
  %s11 = ssub.s32 1, %s9
  %s12 = scalar_select 0, %s11, %s9
  $region1: #{mlp_forward.1} parent=0
    #allocation2 [shape = 'u8[16384]{0}', space=vmem, size = 0x4000, scoped, tag = 'input window, operand 0']
    #allocation3 [shape = 's32[2]{0}', space=sflag, size = 0x8, scoped, tag = 'scoped memory for mlp_forward.1']
    #allocation4 [shape = 'u8[8192]{0}', space=vmem, size = 0x2000, scoped, tag = 'input window, operand 1, single buffered']
    #allocation5 [shape = 's32[1]{0}', space=sflag, size = 0x4, scoped, tag = 'scoped memory for mlp_forward.1']
    #allocation6 [shape = 'u8[8192]{0}', space=vmem, size = 0x2000, scoped, tag = 'input window, operand 3, single buffered']
    #allocation7 [shape = 'u8[8192]{0}', space=vmem, size = 0x2000, scoped, tag = 'input window, operand 4, single buffered']
    #allocation8 [shape = 's32[1]{0}', space=sflag, size = 0x4, scoped, tag = 'scoped memory for mlp_forward.1']
    #allocation9 [shape = 'u8[8192]{0}', space=vmem, size = 0x2000, scoped, tag = 'input window, operand 6, single buffered']
    %13 = vsyncpa [#allocation3], 0
    %s14 = scalar_lea.sflag [#allocation3], 1
    %15 = vsyncpa %s14, 0
    %16 = vsyncpa [#allocation5], 0
    %17 = vsyncpa [#allocation8], 0
    loop: start=0, step=1, limit=4
    $region2: #{mlp_forward.1} parent=1 // loop_pre_header
      _
    $region3: #{mlp_forward.1} parent=1 // loop_header
      %s19 = sphi 0, %s23
      %p20 = scmp.ge.s32.totalorder %s19, 4
      %s29 = sphi 0, %s31
      %s32 = sphi 0, %s29
      %s33 = sphi 0, %s32
      %s49 = sphi 0, %s33
      %s53 = sphi 0, %s53
      %s55 = sphi 0, %s53
      %s56 = sphi 0, %s55
      %s70 = sphi 0, %s56
      %s74 = sphi 0, %s74
      %s76 = sphi 0, %s74
      %s77 = sphi 0, %s76
      %s91 = sphi 0, %s77
      %s95 = sphi 0, %s95
      %s97 = sphi 0, %s95
      %s98 = sphi 0, %s97
      %s112 = sphi 0, %s98
      %s116 = sphi 0, %s116
      %s118 = sphi 0, %s116
      %s119 = sphi 0, %s118
      %s133 = sphi 0, %s119
      %s137 = sphi 0, %s137
      %s139 = sphi 0, %s137
      %s140 = sphi 0, %s139
      %s154 = sphi 0, %s140
      %s158 = sphi 0, %s158
      %s160 = sphi 0, %s158
      %s161 = sphi 0, %s160
      %s175 = sphi 0, %s161
      %s179 = sphi 0, %s179
      %s181 = sphi 0, %s179
      %s182 = sphi 0, %s181
      %s196 = sphi 0, %s182
      %s202 = sphi 0, %s204
      %s205 = sphi 0, %s202
      %s206 = sphi 0, %s205
      %s222 = sphi 0, %s206
    $region4: #{mlp_forward.1} parent=1 // loop_header_branch
      %22 = sbr.rel (%p20) target = $region8
    $region5: #{mlp_forward.1} parent=1 // loop_body
      %s24 = ssub.s32 %s19, 1
      %s25 = ssub.s32 %s19, 2
      %s26 = sadd.s32 %s19, 1
      %s27 = ssub.s32 %s19, %s26
      %p28 = scmp.eq.s32.totalorder %s27, 0
      %s30 = sadd.s32 %s29, 1
      %s31 = scalar_select %p28, %s29, %s30
      %p34 = pneg %p28
      %p35 = scmp.eq.s32.totalorder %s19, 1
      %p36 = por %p34, %p35
      %p37 = scmp.ne.s32.totalorder %s29, %s32
      %p38 = scmp.eq.s32.totalorder %s19, 0
      %p39 = por %p37, %p38
      %p40 = scmp.ne.s32.totalorder %s29, %s32
      %p41 = scmp.eq.s32.totalorder %s24, 1
      %p42 = por %p40, %p41
      %p43 = scmp.ne.s32.totalorder %s32, %s33
      %p44 = scmp.eq.s32.totalorder %s24, 0
      %p45 = por %p43, %p44
      %p46 = scmp.ne.s32.totalorder %s32, %s33
      %p47 = scmp.eq.s32.totalorder %s25, 1
      %p48 = por %p46, %p47
      %p50 = scmp.ne.s32.totalorder %s33, %s49
      %p51 = scmp.eq.s32.totalorder %s25, 0
      %p52 = por %p50, %p51
      %s54 = sadd.s32 %s53, 1
      %p57 = scmp.eq.s32.totalorder %s19, 1
      %p58 = scmp.ne.s32.totalorder %s53, %s55
      %p59 = scmp.eq.s32.totalorder %s19, 0
      %p60 = por %p58, %p59
      %p61 = scmp.ne.s32.totalorder %s53, %s55
      %p62 = scmp.eq.s32.totalorder %s24, 1
      %p63 = por %p61, %p62
      %p64 = scmp.ne.s32.totalorder %s55, %s56
      %p65 = scmp.eq.s32.totalorder %s24, 0
      %p66 = por %p64, %p65
      %p67 = scmp.ne.s32.totalorder %s55, %s56
      %p68 = scmp.eq.s32.totalorder %s25, 1
      %p69 = por %p67, %p68
      %p71 = scmp.ne.s32.totalorder %s56, %s70
      %p72 = scmp.eq.s32.totalorder %s25, 0
      %p73 = por %p71, %p72
      %s75 = sadd.s32 %s74, 1
      %p78 = scmp.eq.s32.totalorder %s19, 1
      %p79 = scmp.ne.s32.totalorder %s74, %s76
      %p80 = scmp.eq.s32.totalorder %s19, 0
      %p81 = por %p79, %p80
      %p82 = scmp.ne.s32.totalorder %s74, %s76
      %p83 = scmp.eq.s32.totalorder %s24, 1
      %p84 = por %p82, %p83
      %p85 = scmp.ne.s32.totalorder %s76, %s77
      %p86 = scmp.eq.s32.totalorder %s24, 0
      %p87 = por %p85, %p86
      %p88 = scmp.ne.s32.totalorder %s76, %s77
      %p89 = scmp.eq.s32.totalorder %s25, 1
      %p90 = por %p88, %p89
      %p92 = scmp.ne.s32.totalorder %s77, %s91
      %p93 = scmp.eq.s32.totalorder %s25, 0
      %p94 = por %p92, %p93
      %s96 = sadd.s32 %s95, 1
      %p99 = scmp.eq.s32.totalorder %s19, 1
      %p100 = scmp.ne.s32.totalorder %s95, %s97
      %p101 = scmp.eq.s32.totalorder %s19, 0
      %p102 = por %p100, %p101
      %p103 = scmp.ne.s32.totalorder %s95, %s97
      %p104 = scmp.eq.s32.totalorder %s24, 1
      %p105 = por %p103, %p104
      %p106 = scmp.ne.s32.totalorder %s97, %s98
      %p107 = scmp.eq.s32.totalorder %s24, 0
      %p108 = por %p106, %p107
      %p109 = scmp.ne.s32.totalorder %s97, %s98
      %p110 = scmp.eq.s32.totalorder %s25, 1
      %p111 = por %p109, %p110
      %p113 = scmp.ne.s32.totalorder %s98, %s112
      %p114 = scmp.eq.s32.totalorder %s25, 0
      %p115 = por %p113, %p114
      %s117 = sadd.s32 %s116, 1
      %p120 = scmp.eq.s32.totalorder %s19, 1
      %p121 = scmp.ne.s32.totalorder %s116, %s118
      %p122 = scmp.eq.s32.totalorder %s19, 0
      %p123 = por %p121, %p122
      %p124 = scmp.ne.s32.totalorder %s116, %s118
      %p125 = scmp.eq.s32.totalorder %s24, 1
      %p126 = por %p124, %p125
      %p127 = scmp.ne.s32.totalorder %s118, %s119
      %p128 = scmp.eq.s32.totalorder %s24, 0
      %p129 = por %p127, %p128
      %p130 = scmp.ne.s32.totalorder %s118, %s119
      %p131 = scmp.eq.s32.totalorder %s25, 1
      %p132 = por %p130, %p131
      %p134 = scmp.ne.s32.totalorder %s119, %s133
      %p135 = scmp.eq.s32.totalorder %s25, 0
      %p136 = por %p134, %p135
      %s138 = sadd.s32 %s137, 1
      %p141 = scmp.eq.s32.totalorder %s19, 1
      %p142 = scmp.ne.s32.totalorder %s137, %s139
      %p143 = scmp.eq.s32.totalorder %s19, 0
      %p144 = por %p142, %p143
      %p145 = scmp.ne.s32.totalorder %s137, %s139
      %p146 = scmp.eq.s32.totalorder %s24, 1
      %p147 = por %p145, %p146
      %p148 = scmp.ne.s32.totalorder %s139, %s140
      %p149 = scmp.eq.s32.totalorder %s24, 0
      %p150 = por %p148, %p149
      %p151 = scmp.ne.s32.totalorder %s139, %s140
      %p152 = scmp.eq.s32.totalorder %s25, 1
      %p153 = por %p151, %p152
      %p155 = scmp.ne.s32.totalorder %s140, %s154
      %p156 = scmp.eq.s32.totalorder %s25, 0
      %p157 = por %p155, %p156
      %s159 = sadd.s32 %s158, 1
      %p162 = scmp.eq.s32.totalorder %s19, 1
      %p163 = scmp.ne.s32.totalorder %s158, %s160
      %p164 = scmp.eq.s32.totalorder %s19, 0
      %p165 = por %p163, %p164
      %p166 = scmp.ne.s32.totalorder %s158, %s160
      %p167 = scmp.eq.s32.totalorder %s24, 1
      %p168 = por %p166, %p167
      %p169 = scmp.ne.s32.totalorder %s160, %s161
      %p170 = scmp.eq.s32.totalorder %s24, 0
      %p171 = por %p169, %p170
      %p172 = scmp.ne.s32.totalorder %s160, %s161
      %p173 = scmp.eq.s32.totalorder %s25, 1
      %p174 = por %p172, %p173
      %p176 = scmp.ne.s32.totalorder %s161, %s175
      %p177 = scmp.eq.s32.totalorder %s25, 0
      %p178 = por %p176, %p177
      %s180 = sadd.s32 %s179, 1
      %p183 = scmp.eq.s32.totalorder %s19, 1
      %p184 = scmp.ne.s32.totalorder %s179, %s181
      %p185 = scmp.eq.s32.totalorder %s19, 0
      %p186 = por %p184, %p185
      %p187 = scmp.ne.s32.totalorder %s179, %s181
      %p188 = scmp.eq.s32.totalorder %s24, 1
      %p189 = por %p187, %p188
      %p190 = scmp.ne.s32.totalorder %s181, %s182
      %p191 = scmp.eq.s32.totalorder %s24, 0
      %p192 = por %p190, %p191
      %p193 = scmp.ne.s32.totalorder %s181, %s182
      %p194 = scmp.eq.s32.totalorder %s25, 1
      %p195 = por %p193, %p194
      %p197 = scmp.ne.s32.totalorder %s182, %s196
      %p198 = scmp.eq.s32.totalorder %s25, 0
      %p199 = por %p197, %p198
      %s200 = ssub.s32 %s19, %s26
      %p201 = scmp.eq.s32.totalorder %s200, 0
      %s203 = sadd.s32 %s202, 1
      %s204 = scalar_select %p201, %s202, %s203
      %p207 = pneg %p201
      %p208 = scmp.eq.s32.totalorder %s19, 1
      %p209 = por %p207, %p208
      %p210 = scmp.ne.s32.totalorder %s202, %s205
      %p211 = scmp.eq.s32.totalorder %s19, 0
      %p212 = por %p210, %p211
      %p213 = scmp.ne.s32.totalorder %s202, %s205
      %p214 = scmp.eq.s32.totalorder %s24, 1
      %p215 = por %p213, %p214
      %p216 = scmp.ne.s32.totalorder %s205, %s206
      %p217 = scmp.eq.s32.totalorder %s24, 0
      %p218 = por %p216, %p217
      %p219 = scmp.ne.s32.totalorder %s205, %s206
      %p220 = scmp.eq.s32.totalorder %s25, 1
      %p221 = por %p219, %p220
      %p223 = scmp.ne.s32.totalorder %s206, %s222
      %p224 = scmp.eq.s32.totalorder %s25, 0
      %p225 = por %p223, %p224
      %p226 = scmp.le.s32.totalorder 1, %s19
      %p227 = scmp.lt.s32.totalorder %s19, 3
      %p228 = pnand %p226, %p227
      %p229 = pneg %p228
      // Predicated region
      $region9: #{mlp_forward.1} parent=5 // pred_check
        _
      $region10: #{mlp_forward.1} parent=5 // pred_check_branch
        %231 = sbr.rel (%p228) target = $region12
      $region11: #{mlp_forward.1} parent=5 // pred_region
        %s232 = ssub.s32 %s19, 1
        // Predicated region
        $region13: #{mlp_forward.1} parent=11 // pred_check
          %p233 = pneg %p66
        $region14: #{mlp_forward.1} parent=11 // pred_check_branch
          %235 = sbr.rel (%p233) target = $region16
        $region15: #{mlp_forward.1} parent=11 // pred_region
          %s237 = ssub.s32 256, 256
          %238 = vsyncadd [#allocation5], %s237
          %s239 = sshll.u32 [#allocation4], 4
          %s240 = int_to_ptr.vmem [resolvable:$true] %s239
          %245 = dma.hbm_to_vmem [thread:$0]  %s1, 256, %s240, [#allocation5], 64, 64, 4
        $region16: #{mlp_forward.1} parent=11 // pred_fallthru
          _
        // Predicated region
        $region17: #{mlp_forward.1} parent=11 // pred_check
          %p246 = pneg %p87
        $region18: #{mlp_forward.1} parent=11 // pred_check_branch
          %248 = sbr.rel (%p246) target = $region20
        $region19: #{mlp_forward.1} parent=11 // pred_region
          _
        $region20: #{mlp_forward.1} parent=11 // pred_fallthru
          _
        // Predicated region
        $region21: #{mlp_forward.1} parent=11 // pred_check
          %p249 = pneg %p108
        $region22: #{mlp_forward.1} parent=11 // pred_check_branch
          %251 = sbr.rel (%p249) target = $region24
        $region23: #{mlp_forward.1} parent=11 // pred_region
          %s253 = ssub.s32 256, 256
          %254 = vsyncadd [#allocation5], %s253
          %s255 = sshll.u32 [#allocation6], 4
          %s256 = int_to_ptr.vmem [resolvable:$true] %s255
          %261 = dma.hbm_to_vmem [thread:$0]  %s3, 256, %s256, [#allocation5], 64, 64, 4
        $region24: #{mlp_forward.1} parent=11 // pred_fallthru
          _
        // Predicated region
        $region25: #{mlp_forward.1} parent=11 // pred_check
          %p262 = pneg %p129
        $region26: #{mlp_forward.1} parent=11 // pred_check_branch
          %264 = sbr.rel (%p262) target = $region28
        $region27: #{mlp_forward.1} parent=11 // pred_region
          %s266 = ssub.s32 256, 256
          %267 = vsyncadd [#allocation8], %s266
          %s268 = sshll.u32 [#allocation7], 4
          %s269 = int_to_ptr.vmem [resolvable:$true] %s268
          %274 = dma.hbm_to_vmem [thread:$0]  %s4, 256, %s269, [#allocation8], 64, 64, 4
        $region28: #{mlp_forward.1} parent=11 // pred_fallthru
          _
        // Predicated region
        $region29: #{mlp_forward.1} parent=11 // pred_check
          %p275 = pneg %p150
        $region30: #{mlp_forward.1} parent=11 // pred_check_branch
          %277 = sbr.rel (%p275) target = $region32
        $region31: #{mlp_forward.1} parent=11 // pred_region
          _
        $region32: #{mlp_forward.1} parent=11 // pred_fallthru
          _
        // Predicated region
        $region33: #{mlp_forward.1} parent=11 // pred_check
          %p278 = pneg %p171
        $region34: #{mlp_forward.1} parent=11 // pred_check_branch
          %280 = sbr.rel (%p278) target = $region36
        $region35: #{mlp_forward.1} parent=11 // pred_region
          %s282 = ssub.s32 256, 256
          %283 = vsyncadd [#allocation8], %s282
          %s284 = sshll.u32 [#allocation9], 4
          %s285 = int_to_ptr.vmem [resolvable:$true] %s284
          %290 = dma.hbm_to_vmem [thread:$0]  %s6, 256, %s285, [#allocation8], 64, 64, 4
        $region36: #{mlp_forward.1} parent=11 // pred_fallthru
          _
        // Predicated region
        $region37: #{mlp_forward.1} parent=11 // pred_check
          %p291 = pneg %p192
        $region38: #{mlp_forward.1} parent=11 // pred_check_branch
          %293 = sbr.rel (%p291) target = $region40
        $region39: #{mlp_forward.1} parent=11 // pred_region
          _
        $region40: #{mlp_forward.1} parent=11 // pred_fallthru
          _
      $region12: #{mlp_forward.1} parent=5 // pred_fallthru
        _
      %p294 = scmp.lt.s32.totalorder %s19, 2
      // Predicated region
      $region41: #{mlp_forward.1} parent=5 // pred_check
        %p295 = pneg %p294
      $region42: #{mlp_forward.1} parent=5 // pred_check_branch
        %297 = sbr.rel (%p295) target = $region44
      $region43: #{mlp_forward.1} parent=5 // pred_region
        // Predicated region
        $region45: #{mlp_forward.1} parent=43 // pred_check
          %p298 = pneg %p39
        $region46: #{mlp_forward.1} parent=43 // pred_check_branch
          %300 = sbr.rel (%p298) target = $region48
        $region47: #{mlp_forward.1} parent=43 // pred_region
          %s301 = sand.u32 %s29, 1
          %s302 = scalar_lea.sflag [#allocation3], %s301
          %s303 = sand.u32 %s29, 1
          %s304 = smul.addr %s303, 16
          %s305 = scalar_lea.vmem [#allocation2], %s304
          %s307 = ssub.s32 256, 256
          %308 = vsyncadd %s302, %s307
          %s309 = smul.addr %s19, 128
          %s310 = scalar_lea.hbm %s0, %s309
          %s311 = sshll.u32 %s305, 4
          %s312 = int_to_ptr.vmem [resolvable:$true] %s311
          %317 = dma.hbm_to_vmem [thread:$0]  %s310, 256, %s312, %s302, 256, 128, 8
        $region48: #{mlp_forward.1} parent=43 // pred_fallthru
          _
      $region44: #{mlp_forward.1} parent=5 // pred_fallthru
        _
      %p318 = scmp.le.s32.totalorder 1, %s19
      %p319 = scmp.lt.s32.totalorder %s19, 3
      %p320 = pnand %p318, %p319
      %p321 = pneg %p320
      // Predicated region
      $region49: #{mlp_forward.1} parent=5 // pred_check
        _
      $region50: #{mlp_forward.1} parent=5 // pred_check_branch
        %323 = sbr.rel (%p320) target = $region52
      $region51: #{mlp_forward.1} parent=5 // pred_region
        %s324 = ssub.s32 %s19, 1
        %s325 = sand.u32 %s32, 1
        %s326 = scalar_lea.sflag [#allocation3], %s325
        %s327 = sand.u32 %s32, 1
        %s328 = smul.addr %s327, 16
        %s329 = scalar_lea.vmem [#allocation2], %s328
        // Predicated region
        $region53: #{mlp_forward.1} parent=51 // pred_check
          %p330 = pneg %p45
        $region54: #{mlp_forward.1} parent=51 // pred_check_branch
          %332 = sbr.rel (%p330) target = $region56
        $region55: #{mlp_forward.1} parent=51 // pred_region
          %333 = dma.done %s326, 256
        $region56: #{mlp_forward.1} parent=51 // pred_fallthru
          _
        // Predicated region
        $region57: #{mlp_forward.1} parent=51 // pred_check
          %p334 = pneg %p66
        $region58: #{mlp_forward.1} parent=51 // pred_check_branch
          %336 = sbr.rel (%p334) target = $region60
        $region59: #{mlp_forward.1} parent=51 // pred_region
          %337 = dma.done [#allocation5], 256
        $region60: #{mlp_forward.1} parent=51 // pred_fallthru
          _
        // Predicated region
        $region61: #{mlp_forward.1} parent=51 // pred_check
          %p338 = pneg %p108
        $region62: #{mlp_forward.1} parent=51 // pred_check_branch
          %340 = sbr.rel (%p338) target = $region64
        $region63: #{mlp_forward.1} parent=51 // pred_region
          %341 = dma.done [#allocation5], 256
        $region64: #{mlp_forward.1} parent=51 // pred_fallthru
          _
        // Predicated region
        $region65: #{mlp_forward.1} parent=51 // pred_check
          %p342 = pneg %p129
        $region66: #{mlp_forward.1} parent=51 // pred_check_branch
          %344 = sbr.rel (%p342) target = $region68
        $region67: #{mlp_forward.1} parent=51 // pred_region
          %345 = dma.done [#allocation8], 256
        $region68: #{mlp_forward.1} parent=51 // pred_fallthru
          _
        // Predicated region
        $region69: #{mlp_forward.1} parent=51 // pred_check
          %p346 = pneg %p171
        $region70: #{mlp_forward.1} parent=51 // pred_check_branch
          %348 = sbr.rel (%p346) target = $region72
        $region71: #{mlp_forward.1} parent=51 // pred_region
          %349 = dma.done [#allocation8], 256
        $region72: #{mlp_forward.1} parent=51 // pred_fallthru
          _
        %s350 = sand.u32 %s32, 1
        %s351 = scalar_lea.sflag [#allocation3], %s350
        %s352 = sand.u32 %s32, 1
        %s353 = smul.addr %s352, 16
        %s354 = scalar_lea.vmem [#allocation2], %s353
        %p355 = pneg %p45
        %p356 = pneg %p42
        %p357 = pneg %p66
        %p358 = pneg %p63
        %p359 = pneg %p87
        %p360 = pneg %p84
        %p361 = pneg %p108
        %p362 = pneg %p105
        %p363 = pneg %p129
        %p364 = pneg %p126
        %p365 = pneg %p150
        %p366 = pneg %p147
        %p367 = pneg %p171
        %p368 = pneg %p168
        %p369 = pneg %p192
        %p370 = pneg %p189
        %p371 = pneg %p218
        %p372 = pneg %p215
        %p373 = scmp.lt.s32.totalorder %s24, 1
        %s374 = scalar_select %p373, %s24, 1
        %s375 = smul.addr %s374, 8
        %s376 = scalar_lea.vmem %s8, %s375
        %p377 = scmp.lt.s32.totalorder %s24, 1
        %s378 = scalar_select %p377, %s24, 1
        %s379 = smul.addr %s378, 8
        %s380 = scalar_lea.vmem %s8, %s379
        %v382 = vld [vmem:[%s329] sm:$0xff]
        %v383 = vld [vmem:[%s329 + $0x8] sm:$0xff]
        %v384 = vpack.c.bf16 %v383, %v382
        %v385 = vld [vmem:[#allocation4] sm:$0xf]
        %v386 = vld [vmem:[#allocation4 + $0x4] sm:$0xf]
        %v387 = vld [vmem:[#allocation4 + $0x8] sm:$0xf]
        %v388 = vld [vmem:[#allocation4 + $0xc] sm:$0xf]
        %v389 = vld [vmem:[%s2] sm:$0x1]
        %v391 = vlaneseq
        %v392 = vshrl.u32 %v391, 7
        %v393 = vsub.s32 0, %v392
        %v394 = vrot.slane %v389, %v393
        %v400 = vunpack.c.l.b16 %v385
        %v401 = vunpack.c.l.b16 %v386
        %v402 = vunpack.c.l.b16 %v387
        %v403 = vunpack.c.l.b16 %v388
        %v404 = vpack.c.b16 %v401, %v400
        %v405 = vpack.c.b16 %v403, %v402
        %vm408 = vcmask 261120
        %v410 = vsel %vm408, %v384, 0
        %412 = vmatprep.subr.bf16.mxu0 0
        %413 = vmatpush1.bf16.msra.mxu0 0
        %414 = vmatprep.subr.bf16.mxu0 0
        %415 = vmatpush1.bf16.msra.mxu0 0
        %416 = vmatprep.subr.bf16.mxu0 0
        %417 = vmatpush1.bf16.msra.mxu0 0
        %418 = vmatprep.subr.bf16.mxu0 0
        %419 = vmatpush1.bf16.msra.mxu0 0
        %420 = vmatprep.subr.bf16.mxu0 0
        %421 = vmatpush1.bf16.msra.mxu0 0
        %422 = vmatprep.subr.bf16.mxu0 0
        %423 = vmatpush1.bf16.msra.mxu0 0
        %424 = vmatprep.subr.bf16.mxu0 0
        %425 = vmatpush1.bf16.msra.mxu0 %v405
        %426 = vmatprep.subr.bf16.mxu0 0
        %427 = vmatpush1.bf16.msra.mxu0 %v404
        %428 = vmatprep.subr.bf16.mxu0 0
        %429 = vmatpush2.bf16.msra.mxu0 0
        %430 = vmatprep.subr.bf16.mxu0 0
        %431 = vmatpush2.bf16.msra.mxu0 0
        %432 = vmatprep.subr.bf16.mxu0 0
        %433 = vmatpush2.bf16.msra.mxu0 0
        %434 = vmatprep.subr.bf16.mxu0 0
        %435 = vmatpush2.bf16.msra.mxu0 0
        %436 = vmatprep.subr.bf16.mxu0 0
        %437 = vmatpush2.bf16.msra.mxu0 0
        %438 = vmatprep.subr.bf16.mxu0 0
        %439 = vmatpush2.bf16.msra.mxu0 0
        %440 = vmatprep.subr.bf16.mxu0 0
        %441 = vmatpush2.bf16.msra.mxu0 0
        %442 = vmatprep.subr.bf16.mxu0 0
        %443 = vmatpush2.bf16.msra.mxu0 0
        %444 = vmatprep.mubr.bf16.mxu0 0
        %445 = vmatmul.mubr.bf16.gmra.mxu0 %v410
        %v446 = vpop.f32.mrf.mxu0
        %v447 = vadd.f32 %v394, %v446
        %v448 = vpop.f32.mrf.mxu0
        %v449 = vpop.f32.mrf.mxu0
        %v450 = vadd.f32 %v394, %v449
        %v451 = vpop.f32.mrf.mxu0
        %452 = vdwg.mxu0
        %v453 = vmax.f32 %v447, 0.0
        %v454 = vmax.f32 %v450, 0.0
        %v455 = vpack.c.bf16 %v453, %v453
        %v456 = vpack.c.bf16 %v454, %v454
        %v457 = vld [vmem:[#allocation6] sm:$0xf]
        %v458 = vld [vmem:[#allocation6 + $0x4] sm:$0xf]
        %v459 = vld [vmem:[#allocation6 + $0x8] sm:$0xf]
        %v460 = vld [vmem:[#allocation6 + $0xc] sm:$0xf]
        %v461 = vld [vmem:[#allocation7] sm:$0xf]
        %v462 = vld [vmem:[#allocation7 + $0x4] sm:$0xf]
        %v463 = vld [vmem:[#allocation7 + $0x8] sm:$0xf]
        %v464 = vld [vmem:[#allocation7 + $0xc] sm:$0xf]
        %v469 = vunpack.c.l.b16 %v461
        %v470 = vunpack.c.l.b16 %v462
        %v471 = vunpack.c.l.b16 %v463
        %v472 = vunpack.c.l.b16 %v464
        %v473 = vpack.c.b16 %v470, %v469
        %v474 = vpack.c.b16 %v472, %v471
        %v478 = vsel %vm408, %v456, 0
        %480 = vmatprep.subr.bf16.mxu0 0
        %481 = vmatpush1.bf16.msra.mxu0 0
        %482 = vmatprep.subr.bf16.mxu0 0
        %483 = vmatpush1.bf16.msra.mxu0 0
        %484 = vmatprep.subr.bf16.mxu0 0
        %485 = vmatpush1.bf16.msra.mxu0 0
        %486 = vmatprep.subr.bf16.mxu0 0
        %487 = vmatpush1.bf16.msra.mxu0 0
        %488 = vmatprep.subr.bf16.mxu0 0
        %489 = vmatpush1.bf16.msra.mxu0 0
        %490 = vmatprep.subr.bf16.mxu0 0
        %491 = vmatpush1.bf16.msra.mxu0 0
        %492 = vmatprep.subr.bf16.mxu0 0
        %493 = vmatpush1.bf16.msra.mxu0 %v474
        %494 = vmatprep.subr.bf16.mxu0 0
        %495 = vmatpush1.bf16.msra.mxu0 %v473
        %496 = vmatprep.subr.bf16.mxu0 0
        %497 = vmatpush2.bf16.msra.mxu0 0
        %498 = vmatprep.subr.bf16.mxu0 0
        %499 = vmatpush2.bf16.msra.mxu0 0
        %500 = vmatprep.subr.bf16.mxu0 0
        %501 = vmatpush2.bf16.msra.mxu0 0
        %502 = vmatprep.subr.bf16.mxu0 0
        %503 = vmatpush2.bf16.msra.mxu0 0
        %504 = vmatprep.subr.bf16.mxu0 0
        %505 = vmatpush2.bf16.msra.mxu0 0
        %506 = vmatprep.subr.bf16.mxu0 0
        %507 = vmatpush2.bf16.msra.mxu0 0
        %508 = vmatprep.subr.bf16.mxu0 0
        %509 = vmatpush2.bf16.msra.mxu0 0
        %510 = vmatprep.subr.bf16.mxu0 0
        %511 = vmatpush2.bf16.msra.mxu0 0
        %512 = vmatprep.mubr.bf16.mxu0 0
        %513 = vmatmul.mubr.bf16.gmra.mxu0 %v478
        %v514 = vpop.f32.mrf.mxu0
        %v515 = vadd.f32 0.0, %v514
        %v516 = vpop.f32.mrf.mxu0
        %v517 = vpop.f32.mrf.mxu0
        %v518 = vpop.f32.mrf.mxu0
        %519 = vdwg.mxu0
        %v524 = vunpack.c.l.b16 %v457
        %v525 = vunpack.c.l.b16 %v458
        %v526 = vunpack.c.l.b16 %v459
        %v527 = vunpack.c.l.b16 %v460
        %v528 = vpack.c.b16 %v525, %v524
        %v529 = vpack.c.b16 %v527, %v526
        %v533 = vsel %vm408, %v455, 0
        %535 = vmatprep.subr.bf16.mxu0 0
        %536 = vmatpush1.bf16.msra.mxu0 0
        %537 = vmatprep.subr.bf16.mxu0 0
        %538 = vmatpush1.bf16.msra.mxu0 0
        %539 = vmatprep.subr.bf16.mxu0 0
        %540 = vmatpush1.bf16.msra.mxu0 0
        %541 = vmatprep.subr.bf16.mxu0 0
        %542 = vmatpush1.bf16.msra.mxu0 0
        %543 = vmatprep.subr.bf16.mxu0 0
        %544 = vmatpush1.bf16.msra.mxu0 0
        %545 = vmatprep.subr.bf16.mxu0 0
        %546 = vmatpush1.bf16.msra.mxu0 0
        %547 = vmatprep.subr.bf16.mxu0 0
        %548 = vmatpush1.bf16.msra.mxu0 %v529
        %549 = vmatprep.subr.bf16.mxu0 0
        %550 = vmatpush1.bf16.msra.mxu0 %v528
        %551 = vmatprep.subr.bf16.mxu0 0
        %552 = vmatpush2.bf16.msra.mxu0 0
        %553 = vmatprep.subr.bf16.mxu0 0
        %554 = vmatpush2.bf16.msra.mxu0 0
        %555 = vmatprep.subr.bf16.mxu0 0
        %556 = vmatpush2.bf16.msra.mxu0 0
        %557 = vmatprep.subr.bf16.mxu0 0
        %558 = vmatpush2.bf16.msra.mxu0 0
        %559 = vmatprep.subr.bf16.mxu0 0
        %560 = vmatpush2.bf16.msra.mxu0 0
        %561 = vmatprep.subr.bf16.mxu0 0
        %562 = vmatpush2.bf16.msra.mxu0 0
        %563 = vmatprep.subr.bf16.mxu0 0
        %564 = vmatpush2.bf16.msra.mxu0 0
        %565 = vmatprep.subr.bf16.mxu0 0
        %566 = vmatpush2.bf16.msra.mxu0 0
        %567 = vmatprep.mubr.bf16.mxu0 0
        %568 = vmatmul.mubr.bf16.gmra.mxu0 %v533
        %v569 = vpop.f32.mrf.mxu0
        %v570 = vadd.f32 %v515, %v569
        %v571 = vpop.f32.mrf.mxu0
        %v572 = vpop.f32.mrf.mxu0
        %v573 = vpop.f32.mrf.mxu0
        %574 = vdwg.mxu0
        %v575 = vld [vmem:[%s5] sm:$0x1]
        %v577 = vlaneseq
        %v578 = vshrl.u32 %v577, 7
        %v579 = vsub.s32 0, %v578
        %v580 = vrot.slane %v575, %v579
        %v582 = vadd.f32 %v570, %v580
        %v583 = vmax.f32 %v582, 0.0
        %v584 = vpack.c.bf16 %v583, %v583
        %v585 = vld [vmem:[#allocation9] sm:$0xf]
        %v586 = vld [vmem:[#allocation9 + $0x4] sm:$0xf]
        %v587 = vld [vmem:[#allocation9 + $0x8] sm:$0xf]
        %v588 = vld [vmem:[#allocation9 + $0xc] sm:$0xf]
        %v589 = vld [vmem:[%s7] sm:$0x1]
        %v591 = vlaneseq
        %v592 = vshrl.u32 %v591, 7
        %v593 = vsub.s32 0, %v592
        %v594 = vrot.slane %v589, %v593
        %v600 = vunpack.c.l.b16 %v585
        %v601 = vunpack.c.l.b16 %v586
        %v602 = vunpack.c.l.b16 %v587
        %v603 = vunpack.c.l.b16 %v588
        %v604 = vpack.c.b16 %v601, %v600
        %v605 = vpack.c.b16 %v603, %v602
        %v609 = vsel %vm408, %v584, 0
        %611 = vmatprep.subr.bf16.mxu0 0
        %612 = vmatpush1.bf16.msra.mxu0 0
        %613 = vmatprep.subr.bf16.mxu0 0
        %614 = vmatpush1.bf16.msra.mxu0 0
        %615 = vmatprep.subr.bf16.mxu0 0
        %616 = vmatpush1.bf16.msra.mxu0 0
        %617 = vmatprep.subr.bf16.mxu0 0
        %618 = vmatpush1.bf16.msra.mxu0 0
        %619 = vmatprep.subr.bf16.mxu0 0
        %620 = vmatpush1.bf16.msra.mxu0 0
        %621 = vmatprep.subr.bf16.mxu0 0
        %622 = vmatpush1.bf16.msra.mxu0 0
        %623 = vmatprep.subr.bf16.mxu0 0
        %624 = vmatpush1.bf16.msra.mxu0 %v605
        %625 = vmatprep.subr.bf16.mxu0 0
        %626 = vmatpush1.bf16.msra.mxu0 %v604
        %627 = vmatprep.subr.bf16.mxu0 0
        %628 = vmatpush2.bf16.msra.mxu0 0
        %629 = vmatprep.subr.bf16.mxu0 0
        %630 = vmatpush2.bf16.msra.mxu0 0
        %631 = vmatprep.subr.bf16.mxu0 0
        %632 = vmatpush2.bf16.msra.mxu0 0
        %633 = vmatprep.subr.bf16.mxu0 0
        %634 = vmatpush2.bf16.msra.mxu0 0
        %635 = vmatprep.subr.bf16.mxu0 0
        %636 = vmatpush2.bf16.msra.mxu0 0
        %637 = vmatprep.subr.bf16.mxu0 0
        %638 = vmatpush2.bf16.msra.mxu0 0
        %639 = vmatprep.subr.bf16.mxu0 0
        %640 = vmatpush2.bf16.msra.mxu0 0
        %641 = vmatprep.subr.bf16.mxu0 0
        %642 = vmatpush2.bf16.msra.mxu0 0
        %643 = vmatprep.mubr.bf16.mxu0 0
        %644 = vmatmul.mubr.bf16.gmra.mxu0 %v609
        %v645 = vpop.f32.mrf.mxu0
        %v646 = vadd.f32 %v594, %v645
        %v647 = vpop.f32.mrf.mxu0
        %v648 = vpop.f32.mrf.mxu0
        %v649 = vpop.f32.mrf.mxu0
        %650 = vdwg.mxu0
        %651 = vst [vmem:[%s380] sm:$0xff] %v646
        %p652 = scmp.lt.s32.totalorder %s24, 1
        %s653 = scalar_select %p652, %s24, 1
        %s654 = smul.addr %s653, 8
        %s655 = scalar_lea.vmem %s8, %s654
        // Predicated region
        $region73: #{mlp_forward.1} parent=51 // pred_check
          %p656 = pneg %p215
        $region74: #{mlp_forward.1} parent=51 // pred_check_branch
          %658 = sbr.rel (%p656) target = $region76
        $region75: #{mlp_forward.1} parent=51 // pred_region
          _
        $region76: #{mlp_forward.1} parent=51 // pred_fallthru
          _
      $region52: #{mlp_forward.1} parent=5 // pred_fallthru
        _
      %p659 = scmp.le.s32.totalorder 2, %s19
      // Predicated region
      $region77: #{mlp_forward.1} parent=5 // pred_check
        %p660 = pneg %p659
      $region78: #{mlp_forward.1} parent=5 // pred_check_branch
        %662 = sbr.rel (%p660) target = $region80
      $region79: #{mlp_forward.1} parent=5 // pred_region
        %s663 = ssub.s32 %s19, 2
        // Predicated region
        $region81: #{mlp_forward.1} parent=79 // pred_check
          %p664 = pneg %p221
        $region82: #{mlp_forward.1} parent=79 // pred_check_branch
          %666 = sbr.rel (%p664) target = $region84
        $region83: #{mlp_forward.1} parent=79 // pred_region
          %p667 = scmp.lt.s32.totalorder %s25, 1
          %s668 = scalar_select %p667, %s25, 1
          %s669 = smul.addr %s668, 8
          %s670 = scalar_lea.vmem %s8, %s669
        $region84: #{mlp_forward.1} parent=79 // pred_fallthru
          _
      $region80: #{mlp_forward.1} parent=5 // pred_fallthru
        _
    $region6: #{mlp_forward.1} parent=1 // loop_footer
      %s23 = sadd.s32 1, %s19
    $region7: #{mlp_forward.1} parent=1 // loop_footer_branch
      %18 = sbr.rel target = $region3
    $region8: #{mlp_forward.1} parent=1 // loop_exit
      _
    %671 = vsyncpa [#allocation3], 1
    %s672 = scalar_lea.sflag [#allocation3], 1
    %673 = vsyncpa %s672, 1
    %674 = vsyncpa [#allocation5], 1
    %675 = vsyncpa [#allocation8], 1

</llo_original>
